<compile_context>
chip_gen: v7x
topology: tpu7x:2x2x1
jax: 0.10.0
libtpu: 0.0.40
codegen_flags: <defaults>
</compile_context>

<pallas_src>
from functools import partial

import jax
import jax.numpy as jnp
from jax.experimental import pallas as pl
from jax.experimental.pallas import tpu as pltpu

# ---- model configuration (small synthetic shapes consistent with the module) ----
EMB_SIZE = 32
HIDDEN_SIZE = 32
VOCAB_SIZE = 32
SEQ_LEN = 2
NUM_LAYERS = 2
BATCH_SIZE = 8
DP_KEEP_PROB = 0.8  # unused: dropout is identity in eval mode

assert EMB_SIZE == HIDDEN_SIZE
assert HIDDEN_SIZE == VOCAB_SIZE
assert SEQ_LEN == NUM_LAYERS


# ---------------------------------------------------------------------------
# Fused Pallas kernel: whole forward in one launch, weights resident in VMEM
# ---------------------------------------------------------------------------
def _rnn_fused_kernel(tok_ref, emb_ref, fc1_wt_ref, fc1_b_ref,
                      fc_wt_ref, fc_b_ref, rec_wt_ref, cell_b_ref,
                      out_wt_ref, out_b_ref, hid_in_ref,
                      logits_ref, hid_out_ref):
    # torch.zeros(seq, batch, vocab); only row NUM_LAYERS-1 is ever written
    # (loop-variable leak in the reference), so zero the output ref explicitly.
    logits_ref[...] = jnp.zeros_like(logits_ref)

    # Weights: loaded once, VMEM/vreg-resident for the entire forward.
    emb = emb_ref[...]
    fc1_wt, fc1_b = fc1_wt_ref[...], fc1_b_ref[...]
    fc_wt, fc_b = fc_wt_ref[...], fc_b_ref[...]
    rec_wt, cell_b = rec_wt_ref[...], cell_b_ref[...]   # cell_b = fc_b + rec_b (folded on host)
    out_wt, out_b = out_wt_ref[...], out_b_ref[...]

    def mm(x, w):
        return jnp.dot(x, w, preferred_element_type=jnp.float32)

    # Working hidden state + its per-timestep snapshot kept as values; HBM writeback
    # happens exactly once at the end of the kernel.
    hid = [hid_in_ref[l] for l in range(NUM_LAYERS)]
    old_hid = list(hid)                                  # old_hidden = hidden.clone()

    lane_ids = jax.lax.broadcasted_iota(jnp.int32, (BATCH_SIZE, VOCAB_SIZE), 1)

    for i in range(SEQ_LEN):
        # embedding lookup as an in-kernel one-hot MXU matmul (exact row select)
        onehot = (tok_ref[i] == lane_ids).astype(jnp.float32)    # (B, VOCAB)
        x = mm(onehot, emb)                                       # drop(embeds) -> identity (eval)
        h_0 = jnp.tanh(mm(x, fc1_wt) + fc1_b)                     # tanh(linear_fc1(x))

        for j in range(NUM_LAYERS):
            # NOTE: reference indexes h_layers with the time index i; clones() makes
            # every layer identical, so a single shared fc/rec weight set is exact.
            if i == 0 and j == 0:
                new_h = jnp.tanh(mm(h_0, fc_wt) + fc_b)
            elif i == 0 and j > 0:
                new_h = jnp.tanh(mm(hid[i - 1], fc_wt) + fc_b)    # hid[-1] (negative index, as in torch)
            elif j == 0 and i > 0:
                new_h = jnp.tanh(mm(h_0, fc_wt) + mm(old_hid[i], rec_wt) + cell_b)
            else:
                # TODO(synk): reference has `old_hidden(i)` (TypeError); using old_hidden[i].
                new_h = jnp.tanh(mm(hid[i - 1], fc_wt) + mm(old_hid[i], rec_wt) + cell_b)
            hid[i] = new_h

        out_layer = mm(hid[NUM_LAYERS - 1], out_wt) + out_b       # linear_out(hidden[-1])
        logits_ref[NUM_LAYERS - 1] = out_layer                    # logits[j], leaked j == NUM_LAYERS-1
        old_hid = list(hid)                                       # old_hidden = hidden.clone()

    # single hidden-state writeback (output aliases the hidden input buffer)
    for l in range(NUM_LAYERS):
        hid_out_ref[l] = hid[l]


_VMEM = pl.BlockSpec(memory_space=pltpu.MemorySpace.VMEM)


@partial(jax.jit, donate_argnums=(2,))
def rnn_forward_pallas(params, inputs, hidden):
    seq_len, batch = inputs.shape
    lyr = params["layers"][0]  # clones(): every stacked layer holds identical weights

    # One-time host-side layout prep (trace-time, free): transpose torch (out, in)
    # weights to (in, out) so the kernel feeds the MXU with plain x @ W, and fold
    # the fc+rec biases of the recurrent cell into a single bias.
    args = (
        inputs.reshape(seq_len, batch, 1).astype(jnp.int32),      # token ids
        params["emb"],                                            # (VOCAB, EMB) already (in, out)
        params["fc1_w"].T, params["fc1_b"].reshape(1, -1),
        lyr["fc_w"].T,     lyr["fc_b"].reshape(1, -1),
        lyr["rec_w"].T,    (lyr["fc_b"] + lyr["rec_b"]).reshape(1, -1),
        params["out_w"].T, params["out_b"].reshape(1, -1),
        hidden,
    )
    n_in = len(args)
    logits, hidden_out = pl.pallas_call(
        _rnn_fused_kernel,
        out_shape=(jax.ShapeDtypeStruct((seq_len, batch, VOCAB_SIZE), jnp.float32),
                   jax.ShapeDtypeStruct((NUM_LAYERS, batch, HIDDEN_SIZE), jnp.float32)),
        in_specs=[_VMEM] * n_in,
        out_specs=(_VMEM, _VMEM),
        input_output_aliases={n_in - 1: 1},   # hidden state updated in place
    )(*args)
    return logits, hidden_out


# ---------------------------------------------------------------------------
# Parameter init (deterministic, mirrors the module's __init__ / init_weights)
# ---------------------------------------------------------------------------
def init_params(key):
    ks = jax.random.split(key, 9)

    def unif(k, shape, a):
        return jax.random.uniform(k, shape, jnp.float32, minval=-a, maxval=a)

    params = {
        # embedding.weight ~ U(-0.1, 0.1), shape (vocab, emb)
        "emb": unif(ks[0], (VOCAB_SIZE, EMB_SIZE), 0.1),
        # linear_fc1 = Linear(hidden, emb): weight (emb, hidden), bias (emb,)
        "fc1_w": unif(ks[1], (EMB_SIZE, HIDDEN_SIZE), 1.0 / jnp.sqrt(HIDDEN_SIZE)),
        "fc1_b": unif(ks[2], (EMB_SIZE,), 1.0 / jnp.sqrt(HIDDEN_SIZE)),
        # linear_rec1 exists in __init__ but is never used in forward -> omitted.
        # linear_out.weight overwritten in init_weights to shape (hidden, vocab), bias zeros
        "out_w": unif(ks[3], (HIDDEN_SIZE, VOCAB_SIZE), 0.1),
        "out_b": jnp.zeros((VOCAB_SIZE,), jnp.float32),
    }
    # one Layer(hidden) deep-copied NUM_LAYERS times -> identical parameters per layer
    layer = {
        "fc_w": unif(ks[4], (HIDDEN_SIZE, HIDDEN_SIZE), 1.0 / jnp.sqrt(HIDDEN_SIZE)),
        "fc_b": unif(ks[5], (HIDDEN_SIZE,), 1.0 / jnp.sqrt(HIDDEN_SIZE)),
        "rec_w": unif(ks[6], (HIDDEN_SIZE, HIDDEN_SIZE), 1.0 / jnp.sqrt(HIDDEN_SIZE)),
        "rec_b": unif(ks[7], (HIDDEN_SIZE,), 1.0 / jnp.sqrt(HIDDEN_SIZE)),
    }
    params["layers"] = [dict(layer) for _ in range(NUM_LAYERS)]
    return params


# ---------------------------------------------------------------------------
# Pure-JAX reference — mirrors RNN.forward line by line (torch weight layout)
# ---------------------------------------------------------------------------
def rnn_forward_ref(params, inputs, hidden):
    seq_len, batch = inputs.shape
    logits = jnp.zeros((seq_len, batch, VOCAB_SIZE), jnp.float32)
    old_hidden = hidden  # hidden.clone()

    def linear(x, w, b):  # torch layout (out, in): x @ W.T + b
        return x @ w.T + b

    for i in range(seq_len):
        embeds = jnp.take(params["emb"], inputs[i], axis=0)
        x = embeds                                                # drop -> identity (eval)
        h_0 = jnp.tanh(linear(x, params["fc1_w"], params["fc1_b"]))
        for j in range(NUM_LAYERS):
            lyr = params["layers"][i]                             # time-index, as in reference
            if i == 0 and j == 0:
                new_h = jnp.tanh(linear(h_0, lyr["fc_w"], lyr["fc_b"]))
            elif j > 0 and i == 0:
                new_h = jnp.tanh(linear(hidden[i - 1], lyr["fc_w"], lyr["fc_b"]))
            elif j == 0 and i > 0:
                new_h = jnp.tanh(linear(h_0, lyr["fc_w"], lyr["fc_b"])
                                 + linear(old_hidden[i], lyr["rec_w"], lyr["rec_b"]))
            else:
                new_h = jnp.tanh(linear(hidden[i - 1], lyr["fc_w"], lyr["fc_b"])
                                 + linear(old_hidden[i], lyr["rec_w"], lyr["rec_b"]))
            hidden = hidden.at[i].set(new_h)
        out_layer = linear(hidden[NUM_LAYERS - 1], params["out_w"], params["out_b"])
        logits = logits.at[j].set(out_layer)                      # leaked j == NUM_LAYERS-1
        old_hidden = hidden
    return logits.reshape(seq_len, batch, VOCAB_SIZE), hidden


# ---------------------------------------------------------------------------
if __name__ == "__main__":
    key = jax.random.PRNGKey(0)
    k_params, k_inputs = jax.random.split(key)

    params = init_params(k_params)
    inputs = jax.random.randint(k_inputs, (SEQ_LEN, BATCH_SIZE), 0, VOCAB_SIZE, dtype=jnp.int32)

    # reference first (the pallas path donates its hidden buffer)
    hidden_ref0 = jnp.zeros((NUM_LAYERS, BATCH_SIZE, HIDDEN_SIZE), jnp.float32)
    logits_ref, hidden_ref = rnn_forward_ref(params, inputs, hidden_ref0)

    hidden0 = jnp.zeros((NUM_LAYERS, BATCH_SIZE, HIDDEN_SIZE), jnp.float32)  # init_hidden()
    logits, hidden_out = rnn_forward_pallas(params, inputs, hidden0)
    logits, hidden_out = jax.block_until_ready((logits, hidden_out))

    assert logits.shape == (SEQ_LEN, BATCH_SIZE, VOCAB_SIZE)
    assert hidden_out.shape == (NUM_LAYERS, BATCH_SIZE, HIDDEN_SIZE)
    assert jnp.allclose(logits, logits_ref, atol=2e-5, rtol=2e-5)
    assert jnp.allclose(hidden_out, hidden_ref, atol=2e-5, rtol=2e-5)

    print("KERNEL_OK")
</pallas_src>

<mosaic_0001>
module attributes {stable_mosaic.version = 11 : i64} {
  func.func @_rnn_fused_kernel(%arg0: memref<2x8x1xi32, #tpu.memory_space<vmem>>, %arg1: memref<32x32xf32, #tpu.memory_space<vmem>>, %arg2: memref<32x32xf32, #tpu.memory_space<vmem>>, %arg3: memref<1x32xf32, #tpu.memory_space<vmem>>, %arg4: memref<32x32xf32, #tpu.memory_space<vmem>>, %arg5: memref<1x32xf32, #tpu.memory_space<vmem>>, %arg6: memref<32x32xf32, #tpu.memory_space<vmem>>, %arg7: memref<1x32xf32, #tpu.memory_space<vmem>>, %arg8: memref<32x32xf32, #tpu.memory_space<vmem>>, %arg9: memref<1x32xf32, #tpu.memory_space<vmem>>, %arg10: memref<2x8x32xf32, #tpu.memory_space<vmem>>, %arg11: memref<2x8x32xf32, #tpu.memory_space<vmem>>, %arg12: memref<2x8x32xf32, #tpu.memory_space<vmem>>) attributes {dimension_semantics = [], scalar_prefetch = 0 : i64, scratch_operands = 0 : i64, tpu.core_type = #tpu.core_type<tc>} {
    %cst = arith.constant 0.000000e+00 : f32
    %0 = vector.broadcast %cst : f32 to vector<2x8x32xf32>
    %c0 = arith.constant 0 : index
    %c0_0 = arith.constant 0 : index
    %c0_1 = arith.constant 0 : index
    %1 = vector.load %arg11[%c0, %c0_0, %c0_1] : memref<2x8x32xf32, #tpu.memory_space<vmem>>, vector<2x8x32xf32>
    tpu.vector_store %arg11[%c0, %c0_0, %c0_1], %0 {strides = array<i32>} : memref<2x8x32xf32, #tpu.memory_space<vmem>>, vector<2x8x32xf32>,
    %c0_2 = arith.constant 0 : index
    %c0_3 = arith.constant 0 : index
    %2 = vector.load %arg4[%c0_2, %c0_3] : memref<32x32xf32, #tpu.memory_space<vmem>>, vector<32x32xf32>
    %c0_4 = arith.constant 0 : index
    %c0_5 = arith.constant 0 : index
    %3 = vector.load %arg5[%c0_4, %c0_5] : memref<1x32xf32, #tpu.memory_space<vmem>>, vector<1x32xf32>
    %c0_6 = arith.constant 0 : index
    %c0_7 = arith.constant 0 : index
    %4 = vector.load %arg6[%c0_6, %c0_7] : memref<32x32xf32, #tpu.memory_space<vmem>>, vector<32x32xf32>
    %c0_8 = arith.constant 0 : index
    %c0_9 = arith.constant 0 : index
    %5 = vector.load %arg7[%c0_8, %c0_9] : memref<1x32xf32, #tpu.memory_space<vmem>>, vector<1x32xf32>
    %c0_10 = arith.constant 0 : index
    %c0_11 = arith.constant 0 : index
    %6 = vector.load %arg8[%c0_10, %c0_11] : memref<32x32xf32, #tpu.memory_space<vmem>>, vector<32x32xf32>
    %c0_12 = arith.constant 0 : index
    %c0_13 = arith.constant 0 : index
    %7 = vector.load %arg9[%c0_12, %c0_13] : memref<1x32xf32, #tpu.memory_space<vmem>>, vector<1x32xf32>
    %c1 = arith.constant 1 : index
    %c0_14 = arith.constant 0 : index
    %c0_15 = arith.constant 0 : index
    %8 = vector.load %arg10[%c1, %c0_14, %c0_15] : memref<2x8x32xf32, #tpu.memory_space<vmem>>, vector<1x8x32xf32>
    %9 = vector.shape_cast %8 : vector<1x8x32xf32> to vector<8x32xf32>
    %cst_16 = arith.constant dense<0.000000e+00> : vector<8x32xf32>
    %10 = tpu.matmul %9, %2, %cst_16 {dimension_numbers = #tpu.dot_dimension_numbers<[1], [0], [0], [1], [0, 0, 1, 1], [], []>} : vector<8x32xf32>, vector<32x32xf32>, vector<8x32xf32> -> vector<8x32xf32>
    %11 = vector.broadcast %3 : vector<1x32xf32> to vector<8x32xf32>
    %12 = arith.addf %10, %11 : vector<8x32xf32>
    %13 = math.tanh %12 : vector<8x32xf32>
    %cst_17 = arith.constant dense<0.000000e+00> : vector<8x32xf32>
    %14 = tpu.matmul %9, %6, %cst_17 {dimension_numbers = #tpu.dot_dimension_numbers<[1], [0], [0], [1], [0, 0, 1, 1], [], []>} : vector<8x32xf32>, vector<32x32xf32>, vector<8x32xf32> -> vector<8x32xf32>
    %15 = vector.broadcast %7 : vector<1x32xf32> to vector<8x32xf32>
    %16 = arith.addf %14, %15 : vector<8x32xf32>
    %c1_18 = arith.constant 1 : index
    %c0_19 = arith.constant 0 : index
    %c0_20 = arith.constant 0 : index
    %17 = vector.load %arg11[%c1_18, %c0_19, %c0_20] : memref<2x8x32xf32, #tpu.memory_space<vmem>>, vector<1x8x32xf32>
    %18 = vector.shape_cast %17 : vector<1x8x32xf32> to vector<8x32xf32>
    %19 = vector.shape_cast %16 : vector<8x32xf32> to vector<1x8x32xf32>
    tpu.vector_store %arg11[%c1_18, %c0_19, %c0_20], %19 {strides = array<i32>} : memref<2x8x32xf32, #tpu.memory_space<vmem>>, vector<1x8x32xf32>,
    %cst_21 = arith.constant dense<0.000000e+00> : vector<8x32xf32>
    %20 = tpu.matmul %13, %2, %cst_21 {dimension_numbers = #tpu.dot_dimension_numbers<[1], [0], [0], [1], [0, 0, 1, 1], [], []>} : vector<8x32xf32>, vector<32x32xf32>, vector<8x32xf32> -> vector<8x32xf32>
    %cst_22 = arith.constant dense<0.000000e+00> : vector<8x32xf32>
    %21 = tpu.matmul %9, %4, %cst_22 {dimension_numbers = #tpu.dot_dimension_numbers<[1], [0], [0], [1], [0, 0, 1, 1], [], []>} : vector<8x32xf32>, vector<32x32xf32>, vector<8x32xf32> -> vector<8x32xf32>
    %22 = arith.addf %20, %21 : vector<8x32xf32>
    %23 = vector.broadcast %5 : vector<1x32xf32> to vector<8x32xf32>
    %24 = arith.addf %22, %23 : vector<8x32xf32>
    %25 = math.tanh %24 : vector<8x32xf32>
    %cst_23 = arith.constant dense<0.000000e+00> : vector<8x32xf32>
    %26 = tpu.matmul %25, %6, %cst_23 {dimension_numbers = #tpu.dot_dimension_numbers<[1], [0], [0], [1], [0, 0, 1, 1], [], []>} : vector<8x32xf32>, vector<32x32xf32>, vector<8x32xf32> -> vector<8x32xf32>
    %27 = vector.broadcast %7 : vector<1x32xf32> to vector<8x32xf32>
    %28 = arith.addf %26, %27 : vector<8x32xf32>
    %c1_24 = arith.constant 1 : index
    %c0_25 = arith.constant 0 : index
    %c0_26 = arith.constant 0 : index
    %29 = vector.load %arg11[%c1_24, %c0_25, %c0_26] : memref<2x8x32xf32, #tpu.memory_space<vmem>>, vector<1x8x32xf32>
    %30 = vector.shape_cast %29 : vector<1x8x32xf32> to vector<8x32xf32>
    %31 = vector.shape_cast %28 : vector<8x32xf32> to vector<1x8x32xf32>
    tpu.vector_store %arg11[%c1_24, %c0_25, %c0_26], %31 {strides = array<i32>} : memref<2x8x32xf32, #tpu.memory_space<vmem>>, vector<1x8x32xf32>,
    %c0_27 = arith.constant 0 : index
    %c0_28 = arith.constant 0 : index
    %c0_29 = arith.constant 0 : index
    %32 = vector.load %arg12[%c0_27, %c0_28, %c0_29] : memref<2x8x32xf32, #tpu.memory_space<vmem>>, vector<1x8x32xf32>
    %33 = vector.shape_cast %32 : vector<1x8x32xf32> to vector<8x32xf32>
    %34 = vector.shape_cast %13 : vector<8x32xf32> to vector<1x8x32xf32>
    tpu.vector_store %arg12[%c0_27, %c0_28, %c0_29], %34 {strides = array<i32>} : memref<2x8x32xf32, #tpu.memory_space<vmem>>, vector<1x8x32xf32>,
    %c1_30 = arith.constant 1 : index
    %c0_31 = arith.constant 0 : index
    %c0_32 = arith.constant 0 : index
    %35 = vector.load %arg12[%c1_30, %c0_31, %c0_32] : memref<2x8x32xf32, #tpu.memory_space<vmem>>, vector<1x8x32xf32>
    %36 = vector.shape_cast %35 : vector<1x8x32xf32> to vector<8x32xf32>
    %37 = vector.shape_cast %25 : vector<8x32xf32> to vector<1x8x32xf32>
    tpu.vector_store %arg12[%c1_30, %c0_31, %c0_32], %37 {strides = array<i32>} : memref<2x8x32xf32, #tpu.memory_space<vmem>>, vector<1x8x32xf32>,
    return
  }
}

</mosaic_0001>

<llo_original>
// kernel: rnn_forward_pallas.1
$region0: #{rnn_forward_pallas.1}
  #allocation0 [shape = 'u32[]', space=smem, size = 0x4, offset = 0x4, fixed_abs, tag = 'smem constant byte address 0x4 - core index']
  #allocation1 [shape = 'u32[144,128]{1,0:T(1,128)}', space=vmem, size = 0x12000, scoped, tag = 'internal scratch']
  %s0 = inlined_call_operand.vmem [shape: s32[2,8,1], index: 0, kind: input, shape index: {}]
  %s1 = inlined_call_operand.vmem [shape: f32[32,32], index: 1, kind: input, shape index: {}]
  %s2 = inlined_call_operand.vmem [shape: f32[32,32], index: 2, kind: input, shape index: {}]
  %s3 = inlined_call_operand.vmem [shape: f32[1,32], index: 3, kind: input, shape index: {}]
  %s4 = inlined_call_operand.vmem [shape: f32[32,32], index: 4, kind: input, shape index: {}]
  %s5 = inlined_call_operand.vmem [shape: f32[1,32], index: 5, kind: input, shape index: {}]
  %s6 = inlined_call_operand.vmem [shape: f32[32,32], index: 6, kind: input, shape index: {}]
  %s7 = inlined_call_operand.vmem [shape: f32[1,32], index: 7, kind: input, shape index: {}]
  %s8 = inlined_call_operand.vmem [shape: f32[32,32], index: 8, kind: input, shape index: {}]
  %s9 = inlined_call_operand.vmem [shape: f32[1,32], index: 9, kind: input, shape index: {}]
  %s10 = inlined_call_operand.vmem [shape: f32[2,8,32], index: 10, kind: input, shape index: {}, may-alias: {10,12}]
  %s11 = inlined_call_operand.hbm [shape: f32[2,8,32], index: 11, kind: output, shape index: {0}]
  %s12 = inlined_call_operand.vmem [shape: f32[2,8,32], index: 12, kind: output, shape index: {1}, may-alias: {10,12}]
  %13 = xla_tuple %s11, %s12
  %s14 = sld [smem:[#allocation0]]
  $region62: #{rnn_forward_pallas.1} parent=0
    _
  %s16 = ssub.s32 1, %s14
  %s17 = scalar_select 0, %s16, %s14
  $region1: #{rnn_forward_pallas.1} parent=0
    #allocation2 [shape = 'u8[8192]{0}', space=vmem, size = 0x2000, scoped, tag = 'output window, operand 0, single buffered']
    #allocation3 [shape = 's32[1]{0}', space=sflag, size = 0x4, scoped, tag = 'scoped memory for rnn_forward_pallas.1']
    %18 = vsyncpa [#allocation3], 0
    // Predicated region
    $region2: #{rnn_forward_pallas.1} parent=1 // pred_check
      _
    $region3: #{rnn_forward_pallas.1} parent=1 // pred_check_branch
      %20 = sbr.rel (0) target = $region5
    $region4: #{rnn_forward_pallas.1} parent=1 // pred_region
      _
    $region5: #{rnn_forward_pallas.1} parent=1 // pred_fallthru
      _
    // Predicated region
    $region6: #{rnn_forward_pallas.1} parent=1 // pred_check
      _
    $region7: #{rnn_forward_pallas.1} parent=1 // pred_check_branch
      %22 = sbr.rel (0) target = $region9
    $region8: #{rnn_forward_pallas.1} parent=1 // pred_region
      _
    $region9: #{rnn_forward_pallas.1} parent=1 // pred_fallthru
      _
    // Predicated region
    $region10: #{rnn_forward_pallas.1} parent=1 // pred_check
      _
    $region11: #{rnn_forward_pallas.1} parent=1 // pred_check_branch
      %24 = sbr.rel (0) target = $region13
    $region12: #{rnn_forward_pallas.1} parent=1 // pred_region
      _
    $region13: #{rnn_forward_pallas.1} parent=1 // pred_fallthru
      _
    // Predicated region
    $region14: #{rnn_forward_pallas.1} parent=1 // pred_check
      _
    $region15: #{rnn_forward_pallas.1} parent=1 // pred_check_branch
      %26 = sbr.rel (0) target = $region17
    $region16: #{rnn_forward_pallas.1} parent=1 // pred_region
      _
    $region17: #{rnn_forward_pallas.1} parent=1 // pred_fallthru
      _
    // Predicated region
    $region18: #{rnn_forward_pallas.1} parent=1 // pred_check
      _
    $region19: #{rnn_forward_pallas.1} parent=1 // pred_check_branch
      %28 = sbr.rel (0) target = $region21
    $region20: #{rnn_forward_pallas.1} parent=1 // pred_region
      _
    $region21: #{rnn_forward_pallas.1} parent=1 // pred_fallthru
      _
    // Predicated region
    $region22: #{rnn_forward_pallas.1} parent=1 // pred_check
      _
    $region23: #{rnn_forward_pallas.1} parent=1 // pred_check_branch
      %30 = sbr.rel (0) target = $region25
    $region24: #{rnn_forward_pallas.1} parent=1 // pred_region
      _
    $region25: #{rnn_forward_pallas.1} parent=1 // pred_fallthru
      _
    // Predicated region
    $region26: #{rnn_forward_pallas.1} parent=1 // pred_check
      _
    $region27: #{rnn_forward_pallas.1} parent=1 // pred_check_branch
      %32 = sbr.rel (0) target = $region29
    $region28: #{rnn_forward_pallas.1} parent=1 // pred_region
      _
    $region29: #{rnn_forward_pallas.1} parent=1 // pred_fallthru
      _
    // Predicated region
    $region30: #{rnn_forward_pallas.1} parent=1 // pred_check
      _
    $region31: #{rnn_forward_pallas.1} parent=1 // pred_check_branch
      %34 = sbr.rel (0) target = $region33
    $region32: #{rnn_forward_pallas.1} parent=1 // pred_region
      _
    $region33: #{rnn_forward_pallas.1} parent=1 // pred_fallthru
      _
    // Predicated region
    $region34: #{rnn_forward_pallas.1} parent=1 // pred_check
      _
    $region35: #{rnn_forward_pallas.1} parent=1 // pred_check_branch
      %36 = sbr.rel (0) target = $region37
    $region36: #{rnn_forward_pallas.1} parent=1 // pred_region
      _
    $region37: #{rnn_forward_pallas.1} parent=1 // pred_fallthru
      _
    // Predicated region
    $region38: #{rnn_forward_pallas.1} parent=1 // pred_check
      _
    $region39: #{rnn_forward_pallas.1} parent=1 // pred_check_branch
      %38 = sbr.rel (0) target = $region41
    $region40: #{rnn_forward_pallas.1} parent=1 // pred_region
      _
    $region41: #{rnn_forward_pallas.1} parent=1 // pred_fallthru
      _
    // Predicated region
    $region42: #{rnn_forward_pallas.1} parent=1 // pred_check
      _
    $region43: #{rnn_forward_pallas.1} parent=1 // pred_check_branch
      %40 = sbr.rel (0) target = $region45
    $region44: #{rnn_forward_pallas.1} parent=1 // pred_region
      _
    $region45: #{rnn_forward_pallas.1} parent=1 // pred_fallthru
      _
    %vm41 = vcmask 261120
    %42 = vst.msk [vmem:[#allocation2] sm:$0xff] %vm41, 0.0
    %43 = vst.msk [vmem:[#allocation2 + $0x8] sm:$0xff] %vm41, 0.0
    %v44 = vld [vmem:[%s4] sm:$0xff]
    %v45 = vld [vmem:[%s4 + $0x8] sm:$0xff]
    %v46 = vld [vmem:[%s4 + $0x10] sm:$0xff]
    %v47 = vld [vmem:[%s4 + $0x18] sm:$0xff]
    %v48 = vld [vmem:[%s5] sm:$0x1]
    %v49 = vld [vmem:[%s6] sm:$0xff]
    %v50 = vld [vmem:[%s6 + $0x8] sm:$0xff]
    %v51 = vld [vmem:[%s6 + $0x10] sm:$0xff]
    %v52 = vld [vmem:[%s6 + $0x18] sm:$0xff]
    %v53 = vld [vmem:[%s7] sm:$0x1]
    %v54 = vld [vmem:[%s8] sm:$0xff]
    %v55 = vld [vmem:[%s8 + $0x8] sm:$0xff]
    %v56 = vld [vmem:[%s8 + $0x10] sm:$0xff]
    %v57 = vld [vmem:[%s8 + $0x18] sm:$0xff]
    %v58 = vld [vmem:[%s9] sm:$0x1]
    %s59 = scalar_lea.vmem %s10, 8
    %v60 = vld [vmem:[%s59] sm:$0xff]
    %v62 = vlaneseq
    %v63 = vshrl.u32 %v62, 7
    %v64 = vsub.s32 0, %v63
    %v65 = vrot.slane %v48, %v64
    %v68 = vsel %vm41, %v60, 0
    %70 = vmatprep.subr.mxu0 0.0
    %71 = vmatpush1.msra.mxu0 %v44
    %72 = vmatprep.subr.mxu0 0.0
    %73 = vmatpush1.msra.mxu0 %v45
    %74 = vmatprep.subr.mxu0 0.0
    %75 = vmatpush1.msra.mxu0 %v46
    %76 = vmatprep.subr.mxu0 0.0
    %77 = vmatpush1.msra.mxu0 %v47
    %78 = vmatprep.subr.mxu0 0.0
    %79 = vmatpush1.msra.mxu0 0.0
    %80 = vmatprep.subr.mxu0 0.0
    %81 = vmatpush1.msra.mxu0 0.0
    %82 = vmatprep.subr.mxu0 0.0
    %83 = vmatpush1.msra.mxu0 0.0
    %84 = vmatprep.subr.mxu0 0.0
    %85 = vmatpush1.msra.mxu0 0.0
    %86 = vmatprep.subr.mxu0 0.0
    %87 = vmatpush1.msra.mxu0 0.0
    %88 = vmatprep.subr.mxu0 0.0
    %89 = vmatpush1.msra.mxu0 0.0
    %90 = vmatprep.subr.mxu0 0.0
    %91 = vmatpush1.msra.mxu0 0.0
    %92 = vmatprep.subr.mxu0 0.0
    %93 = vmatpush1.msra.mxu0 0.0
    %94 = vmatprep.subr.mxu0 0.0
    %95 = vmatpush1.msra.mxu0 0.0
    %96 = vmatprep.subr.mxu0 0.0
    %97 = vmatpush1.msra.mxu0 0.0
    %98 = vmatprep.subr.mxu0 0.0
    %99 = vmatpush1.msra.mxu0 0.0
    %100 = vmatprep.subr.mxu0 0.0
    %101 = vmatpush1.msra.mxu0 0.0
    %102 = vmatprep.subr.mxu0 0.0
    %103 = vmatpush1.msra.mxu0 0.0
    %104 = vmatprep.subr.mxu0 0.0
    %105 = vmatpush1.msra.mxu0 0.0
    %106 = vmatprep.subr.mxu0 0.0
    %107 = vmatpush1.msra.mxu0 0.0
    %108 = vmatprep.subr.mxu0 0.0
    %109 = vmatpush1.msra.mxu0 0.0
    %110 = vmatprep.subr.mxu0 0.0
    %111 = vmatpush1.msra.mxu0 0.0
    %112 = vmatprep.subr.mxu0 0.0
    %113 = vmatpush1.msra.mxu0 0.0
    %114 = vmatprep.subr.mxu0 0.0
    %115 = vmatpush1.msra.mxu0 0.0
    %116 = vmatprep.subr.mxu0 0.0
    %117 = vmatpush1.msra.mxu0 0.0
    %118 = vmatprep.subr.mxu0 0.0
    %119 = vmatpush1.msra.mxu0 0.0
    %120 = vmatprep.subr.mxu0 0.0
    %121 = vmatpush1.msra.mxu0 0.0
    %122 = vmatprep.subr.mxu0 0.0
    %123 = vmatpush1.msra.mxu0 0.0
    %124 = vmatprep.subr.mxu0 0.0
    %125 = vmatpush1.msra.mxu0 0.0
    %126 = vmatprep.subr.mxu0 0.0
    %127 = vmatpush1.msra.mxu0 0.0
    %128 = vmatprep.subr.mxu0 0.0
    %129 = vmatpush1.msra.mxu0 0.0
    %130 = vmatprep.subr.mxu0 0.0
    %131 = vmatpush1.msra.mxu0 0.0
    %132 = vmatprep.subr.mxu0 0.0
    %133 = vmatpush1.msra.mxu0 0.0
    %134 = vmatprep.mubr.f32.mxu0 0.0
    %135 = vmatmul.mubr.f32.gmra.mrb[0].mxu0 %v68
    %v136 = vpop.f32.mrb[0].mxu0
    %v137 = vadd.f32 %v65, %v136
    %v138 = vpop.f32.mrb[0].mxu0
    %139 = vdwg.mxu0
    %v140 = vtanh.pop %v137
    %v142 = vlaneseq
    %v143 = vshrl.u32 %v142, 7
    %v144 = vsub.s32 0, %v143
    %v145 = vrot.slane %v58, %v144
    %147 = vmatprep.subr.mxu0 0.0
    %148 = vmatpush1.msra.mxu0 %v54
    %149 = vmatprep.subr.mxu0 0.0
    %150 = vmatpush1.msra.mxu0 %v55
    %151 = vmatprep.subr.mxu0 0.0
    %152 = vmatpush1.msra.mxu0 %v56
    %153 = vmatprep.subr.mxu0 0.0
    %154 = vmatpush1.msra.mxu0 %v57
    %155 = vmatprep.subr.mxu0 0.0
    %156 = vmatpush1.msra.mxu0 0.0
    %157 = vmatprep.subr.mxu0 0.0
    %158 = vmatpush1.msra.mxu0 0.0
    %159 = vmatprep.subr.mxu0 0.0
    %160 = vmatpush1.msra.mxu0 0.0
    %161 = vmatprep.subr.mxu0 0.0
    %162 = vmatpush1.msra.mxu0 0.0
    %163 = vmatprep.subr.mxu0 0.0
    %164 = vmatpush1.msra.mxu0 0.0
    %165 = vmatprep.subr.mxu0 0.0
    %166 = vmatpush1.msra.mxu0 0.0
    %167 = vmatprep.subr.mxu0 0.0
    %168 = vmatpush1.msra.mxu0 0.0
    %169 = vmatprep.subr.mxu0 0.0
    %170 = vmatpush1.msra.mxu0 0.0
    %171 = vmatprep.subr.mxu0 0.0
    %172 = vmatpush1.msra.mxu0 0.0
    %173 = vmatprep.subr.mxu0 0.0
    %174 = vmatpush1.msra.mxu0 0.0
    %175 = vmatprep.subr.mxu0 0.0
    %176 = vmatpush1.msra.mxu0 0.0
    %177 = vmatprep.subr.mxu0 0.0
    %178 = vmatpush1.msra.mxu0 0.0
    %179 = vmatprep.subr.mxu0 0.0
    %180 = vmatpush1.msra.mxu0 0.0
    %181 = vmatprep.subr.mxu0 0.0
    %182 = vmatpush1.msra.mxu0 0.0
    %183 = vmatprep.subr.mxu0 0.0
    %184 = vmatpush1.msra.mxu0 0.0
    %185 = vmatprep.subr.mxu0 0.0
    %186 = vmatpush1.msra.mxu0 0.0
    %187 = vmatprep.subr.mxu0 0.0
    %188 = vmatpush1.msra.mxu0 0.0
    %189 = vmatprep.subr.mxu0 0.0
    %190 = vmatpush1.msra.mxu0 0.0
    %191 = vmatprep.subr.mxu0 0.0
    %192 = vmatpush1.msra.mxu0 0.0
    %193 = vmatprep.subr.mxu0 0.0
    %194 = vmatpush1.msra.mxu0 0.0
    %195 = vmatprep.subr.mxu0 0.0
    %196 = vmatpush1.msra.mxu0 0.0
    %197 = vmatprep.subr.mxu0 0.0
    %198 = vmatpush1.msra.mxu0 0.0
    %199 = vmatprep.subr.mxu0 0.0
    %200 = vmatpush1.msra.mxu0 0.0
    %201 = vmatprep.subr.mxu0 0.0
    %202 = vmatpush1.msra.mxu0 0.0
    %203 = vmatprep.subr.mxu0 0.0
    %204 = vmatpush1.msra.mxu0 0.0
    %205 = vmatprep.subr.mxu0 0.0
    %206 = vmatpush1.msra.mxu0 0.0
    %207 = vmatprep.subr.mxu0 0.0
    %208 = vmatpush1.msra.mxu0 0.0
    %209 = vmatprep.subr.mxu0 0.0
    %210 = vmatpush1.msra.mxu0 0.0
    %211 = vmatprep.mubr.f32.mxu0 0.0
    %212 = vmatmul.mubr.f32.gmra.mrb[0].mxu0 %v68
    %v213 = vpop.f32.mrb[0].mxu0
    %v214 = vadd.f32 %v145, %v213
    %v215 = vpop.f32.mrb[0].mxu0
    %216 = vdwg.mxu0
    %s217 = scalar_lea.vmem [#allocation2], 8
    %218 = vst.msk [vmem:[%s217] sm:$0xff] %vm41, %v214
    %219 = vmatprep.subr.mxu0 0.0
    %220 = vmatpush1.msra.mxu0 %v49
    %221 = vmatprep.subr.mxu0 0.0
    %222 = vmatpush1.msra.mxu0 %v50
    %223 = vmatprep.subr.mxu0 0.0
    %224 = vmatpush1.msra.mxu0 %v51
    %225 = vmatprep.subr.mxu0 0.0
    %226 = vmatpush1.msra.mxu0 %v52
    %227 = vmatprep.subr.mxu0 0.0
    %228 = vmatpush1.msra.mxu0 0.0
    %229 = vmatprep.subr.mxu0 0.0
    %230 = vmatpush1.msra.mxu0 0.0
    %231 = vmatprep.subr.mxu0 0.0
    %232 = vmatpush1.msra.mxu0 0.0
    %233 = vmatprep.subr.mxu0 0.0
    %234 = vmatpush1.msra.mxu0 0.0
    %235 = vmatprep.subr.mxu0 0.0
    %236 = vmatpush1.msra.mxu0 0.0
    %237 = vmatprep.subr.mxu0 0.0
    %238 = vmatpush1.msra.mxu0 0.0
    %239 = vmatprep.subr.mxu0 0.0
    %240 = vmatpush1.msra.mxu0 0.0
    %241 = vmatprep.subr.mxu0 0.0
    %242 = vmatpush1.msra.mxu0 0.0
    %243 = vmatprep.subr.mxu0 0.0
    %244 = vmatpush1.msra.mxu0 0.0
    %245 = vmatprep.subr.mxu0 0.0
    %246 = vmatpush1.msra.mxu0 0.0
    %247 = vmatprep.subr.mxu0 0.0
    %248 = vmatpush1.msra.mxu0 0.0
    %249 = vmatprep.subr.mxu0 0.0
    %250 = vmatpush1.msra.mxu0 0.0
    %251 = vmatprep.subr.mxu0 0.0
    %252 = vmatpush1.msra.mxu0 0.0
    %253 = vmatprep.subr.mxu0 0.0
    %254 = vmatpush1.msra.mxu0 0.0
    %255 = vmatprep.subr.mxu0 0.0
    %256 = vmatpush1.msra.mxu0 0.0
    %257 = vmatprep.subr.mxu0 0.0
    %258 = vmatpush1.msra.mxu0 0.0
    %259 = vmatprep.subr.mxu0 0.0
    %260 = vmatpush1.msra.mxu0 0.0
    %261 = vmatprep.subr.mxu0 0.0
    %262 = vmatpush1.msra.mxu0 0.0
    %263 = vmatprep.subr.mxu0 0.0
    %264 = vmatpush1.msra.mxu0 0.0
    %265 = vmatprep.subr.mxu0 0.0
    %266 = vmatpush1.msra.mxu0 0.0
    %267 = vmatprep.subr.mxu0 0.0
    %268 = vmatpush1.msra.mxu0 0.0
    %269 = vmatprep.subr.mxu0 0.0
    %270 = vmatpush1.msra.mxu0 0.0
    %271 = vmatprep.subr.mxu0 0.0
    %272 = vmatpush1.msra.mxu0 0.0
    %273 = vmatprep.subr.mxu0 0.0
    %274 = vmatpush1.msra.mxu0 0.0
    %275 = vmatprep.subr.mxu0 0.0
    %276 = vmatpush1.msra.mxu0 0.0
    %277 = vmatprep.subr.mxu0 0.0
    %278 = vmatpush1.msra.mxu0 0.0
    %279 = vmatprep.subr.mxu0 0.0
    %280 = vmatpush1.msra.mxu0 0.0
    %281 = vmatprep.subr.mxu0 0.0
    %282 = vmatpush1.msra.mxu0 0.0
    %283 = vmatprep.mubr.f32.mxu0 0.0
    %284 = vmatmul.mubr.f32.gmra.mrb[0].mxu0 %v68
    %v285 = vpop.f32.mrb[0].mxu0
    %v286 = vadd.f32 0.0, %v285
    %v287 = vpop.f32.mrb[0].mxu0
    %288 = vdwg.mxu0
    %v290 = vsel %vm41, %v140, 0
    %292 = vmatprep.subr.mxu0 0.0
    %293 = vmatpush1.msra.mxu0 %v44
    %294 = vmatprep.subr.mxu0 0.0
    %295 = vmatpush1.msra.mxu0 %v45
    %296 = vmatprep.subr.mxu0 0.0
    %297 = vmatpush1.msra.mxu0 %v46
    %298 = vmatprep.subr.mxu0 0.0
    %299 = vmatpush1.msra.mxu0 %v47
    %300 = vmatprep.subr.mxu0 0.0
    %301 = vmatpush1.msra.mxu0 0.0
    %302 = vmatprep.subr.mxu0 0.0
    %303 = vmatpush1.msra.mxu0 0.0
    %304 = vmatprep.subr.mxu0 0.0
    %305 = vmatpush1.msra.mxu0 0.0
    %306 = vmatprep.subr.mxu0 0.0
    %307 = vmatpush1.msra.mxu0 0.0
    %308 = vmatprep.subr.mxu0 0.0
    %309 = vmatpush1.msra.mxu0 0.0
    %310 = vmatprep.subr.mxu0 0.0
    %311 = vmatpush1.msra.mxu0 0.0
    %312 = vmatprep.subr.mxu0 0.0
    %313 = vmatpush1.msra.mxu0 0.0
    %314 = vmatprep.subr.mxu0 0.0
    %315 = vmatpush1.msra.mxu0 0.0
    %316 = vmatprep.subr.mxu0 0.0
    %317 = vmatpush1.msra.mxu0 0.0
    %318 = vmatprep.subr.mxu0 0.0
    %319 = vmatpush1.msra.mxu0 0.0
    %320 = vmatprep.subr.mxu0 0.0
    %321 = vmatpush1.msra.mxu0 0.0
    %322 = vmatprep.subr.mxu0 0.0
    %323 = vmatpush1.msra.mxu0 0.0
    %324 = vmatprep.subr.mxu0 0.0
    %325 = vmatpush1.msra.mxu0 0.0
    %326 = vmatprep.subr.mxu0 0.0
    %327 = vmatpush1.msra.mxu0 0.0
    %328 = vmatprep.subr.mxu0 0.0
    %329 = vmatpush1.msra.mxu0 0.0
    %330 = vmatprep.subr.mxu0 0.0
    %331 = vmatpush1.msra.mxu0 0.0
    %332 = vmatprep.subr.mxu0 0.0
    %333 = vmatpush1.msra.mxu0 0.0
    %334 = vmatprep.subr.mxu0 0.0
    %335 = vmatpush1.msra.mxu0 0.0
    %336 = vmatprep.subr.mxu0 0.0
    %337 = vmatpush1.msra.mxu0 0.0
    %338 = vmatprep.subr.mxu0 0.0
    %339 = vmatpush1.msra.mxu0 0.0
    %340 = vmatprep.subr.mxu0 0.0
    %341 = vmatpush1.msra.mxu0 0.0
    %342 = vmatprep.subr.mxu0 0.0
    %343 = vmatpush1.msra.mxu0 0.0
    %344 = vmatprep.subr.mxu0 0.0
    %345 = vmatpush1.msra.mxu0 0.0
    %346 = vmatprep.subr.mxu0 0.0
    %347 = vmatpush1.msra.mxu0 0.0
    %348 = vmatprep.subr.mxu0 0.0
    %349 = vmatpush1.msra.mxu0 0.0
    %350 = vmatprep.subr.mxu0 0.0
    %351 = vmatpush1.msra.mxu0 0.0
    %352 = vmatprep.subr.mxu0 0.0
    %353 = vmatpush1.msra.mxu0 0.0
    %354 = vmatprep.subr.mxu0 0.0
    %355 = vmatpush1.msra.mxu0 0.0
    %356 = vmatprep.mubr.f32.mxu0 0.0
    %357 = vmatmul.mubr.f32.gmra.mrb[0].mxu0 %v290
    %v358 = vpop.f32.mrb[0].mxu0
    %v359 = vadd.f32 %v286, %v358
    %v360 = vpop.f32.mrb[0].mxu0
    %361 = vdwg.mxu0
    %v363 = vlaneseq
    %v364 = vshrl.u32 %v363, 7
    %v365 = vsub.s32 0, %v364
    %v366 = vrot.slane %v53, %v365
    %v368 = vadd.f32 %v359, %v366
    %v369 = vtanh.pop %v368
    %v371 = vsel %vm41, %v369, 0
    %373 = vmatprep.subr.mxu0 0.0
    %374 = vmatpush1.msra.mxu0 %v54
    %375 = vmatprep.subr.mxu0 0.0
    %376 = vmatpush1.msra.mxu0 %v55
    %377 = vmatprep.subr.mxu0 0.0
    %378 = vmatpush1.msra.mxu0 %v56
    %379 = vmatprep.subr.mxu0 0.0
    %380 = vmatpush1.msra.mxu0 %v57
    %381 = vmatprep.subr.mxu0 0.0
    %382 = vmatpush1.msra.mxu0 0.0
    %383 = vmatprep.subr.mxu0 0.0
    %384 = vmatpush1.msra.mxu0 0.0
    %385 = vmatprep.subr.mxu0 0.0
    %386 = vmatpush1.msra.mxu0 0.0
    %387 = vmatprep.subr.mxu0 0.0
    %388 = vmatpush1.msra.mxu0 0.0
    %389 = vmatprep.subr.mxu0 0.0
    %390 = vmatpush1.msra.mxu0 0.0
    %391 = vmatprep.subr.mxu0 0.0
    %392 = vmatpush1.msra.mxu0 0.0
    %393 = vmatprep.subr.mxu0 0.0
    %394 = vmatpush1.msra.mxu0 0.0
    %395 = vmatprep.subr.mxu0 0.0
    %396 = vmatpush1.msra.mxu0 0.0
    %397 = vmatprep.subr.mxu0 0.0
    %398 = vmatpush1.msra.mxu0 0.0
    %399 = vmatprep.subr.mxu0 0.0
    %400 = vmatpush1.msra.mxu0 0.0
    %401 = vmatprep.subr.mxu0 0.0
    %402 = vmatpush1.msra.mxu0 0.0
    %403 = vmatprep.subr.mxu0 0.0
    %404 = vmatpush1.msra.mxu0 0.0
    %405 = vmatprep.subr.mxu0 0.0
    %406 = vmatpush1.msra.mxu0 0.0
    %407 = vmatprep.subr.mxu0 0.0
    %408 = vmatpush1.msra.mxu0 0.0
    %409 = vmatprep.subr.mxu0 0.0
    %410 = vmatpush1.msra.mxu0 0.0
    %411 = vmatprep.subr.mxu0 0.0
    %412 = vmatpush1.msra.mxu0 0.0
    %413 = vmatprep.subr.mxu0 0.0
    %414 = vmatpush1.msra.mxu0 0.0
    %415 = vmatprep.subr.mxu0 0.0
    %416 = vmatpush1.msra.mxu0 0.0
    %417 = vmatprep.subr.mxu0 0.0
    %418 = vmatpush1.msra.mxu0 0.0
    %419 = vmatprep.subr.mxu0 0.0
    %420 = vmatpush1.msra.mxu0 0.0
    %421 = vmatprep.subr.mxu0 0.0
    %422 = vmatpush1.msra.mxu0 0.0
    %423 = vmatprep.subr.mxu0 0.0
    %424 = vmatpush1.msra.mxu0 0.0
    %425 = vmatprep.subr.mxu0 0.0
    %426 = vmatpush1.msra.mxu0 0.0
    %427 = vmatprep.subr.mxu0 0.0
    %428 = vmatpush1.msra.mxu0 0.0
    %429 = vmatprep.subr.mxu0 0.0
    %430 = vmatpush1.msra.mxu0 0.0
    %431 = vmatprep.subr.mxu0 0.0
    %432 = vmatpush1.msra.mxu0 0.0
    %433 = vmatprep.subr.mxu0 0.0
    %434 = vmatpush1.msra.mxu0 0.0
    %435 = vmatprep.subr.mxu0 0.0
    %436 = vmatpush1.msra.mxu0 0.0
    %437 = vmatprep.mubr.f32.mxu0 0.0
    %438 = vmatmul.mubr.f32.gmra.mrb[0].mxu0 %v371
    %v439 = vpop.f32.mrb[0].mxu0
    %v440 = vadd.f32 %v145, %v439
    %v441 = vpop.f32.mrb[0].mxu0
    %442 = vdwg.mxu0
    %443 = vst.msk [vmem:[%s217] sm:$0xff] %vm41, %v440
    %444 = vst.msk [vmem:[%s12] sm:$0xff] %vm41, %v140
    %s445 = scalar_lea.vmem %s12, 8
    %446 = vst.msk [vmem:[%s445] sm:$0xff] %vm41, %v369
    // Predicated region
    $region46: #{rnn_forward_pallas.1} parent=1 // pred_check
      _
    $region47: #{rnn_forward_pallas.1} parent=1 // pred_check_branch
      %448 = sbr.rel (0) target = $region49
    $region48: #{rnn_forward_pallas.1} parent=1 // pred_region
      %s450 = ssub.s32 256, 256
      %451 = vsyncadd [#allocation3], %s450
      %s452 = sshll.u32 [#allocation2], 4
      %s453 = int_to_ptr.vmem [resolvable:$true] %s452
      %458 = dma.vmem_to_hbm [thread:$0]  %s453, 256, %s11, [#allocation3], 128, 128, 8
    $region49: #{rnn_forward_pallas.1} parent=1 // pred_fallthru
      _
    // Predicated region
    $region50: #{rnn_forward_pallas.1} parent=1 // pred_check
      _
    $region51: #{rnn_forward_pallas.1} parent=1 // pred_check_branch
      %460 = sbr.rel (0) target = $region53
    $region52: #{rnn_forward_pallas.1} parent=1 // pred_region
      _
    $region53: #{rnn_forward_pallas.1} parent=1 // pred_fallthru
      _
    // Predicated region
    $region54: #{rnn_forward_pallas.1} parent=1 // pred_check
      _
    $region55: #{rnn_forward_pallas.1} parent=1 // pred_check_branch
      %462 = sbr.rel (0) target = $region57
    $region56: #{rnn_forward_pallas.1} parent=1 // pred_region
      %463 = dma.done [#allocation3], 256
    $region57: #{rnn_forward_pallas.1} parent=1 // pred_fallthru
      _
    // Predicated region
    $region58: #{rnn_forward_pallas.1} parent=1 // pred_check
      _
    $region59: #{rnn_forward_pallas.1} parent=1 // pred_check_branch
      %465 = sbr.rel (0) target = $region61
    $region60: #{rnn_forward_pallas.1} parent=1 // pred_region
      _
    $region61: #{rnn_forward_pallas.1} parent=1 // pred_fallthru
      _
    %466 = vsyncpa [#allocation3], 1

</llo_original>
